<compile_context>
chip_gen: v5e
topology: v5e:2x2
jax: 0.10.0
libtpu: 0.0.40
codegen_flags: <defaults>
</compile_context>

<pallas_src>
import jax
import jax.numpy as jnp
from jax import lax
from jax.experimental import pallas as pl
from jax.experimental.pallas import tpu as pltpu


# -----------------------------------------------------------------------------
# Kernel 1: attention + DecoderCell recurrence (single invocation, loop over T)
# -----------------------------------------------------------------------------
def recurrence_kernel(
    hiddens_ref,    # (B, S, 2H)  encoder hidden states
    content_ref,    # (B, H)      initial prev_s
    tgt_gate_ref,   # (T, B, H)   trg @ w_iw[:, :H] + (b_iw+b_hw+b_cw)[:, :H]
    tgt_tilde_ref,  # (T, B, H)   trg @ w_ii       + (b_ii+b_hi+b_ci)
    w_enc_ref,      # (2H, H)     attention.enc_h_in weight
    b_ep_ref,       # (1, H)      b_enc + b_prev (fused attention biases)
    w_prev_ref,     # (H, H)      attention.prev_s_in weight
    w_att_ref,      # (1, H)      attention.linear weight (transposed)
    b_att_ref,      # (1, 1)      attention.linear bias
    w_h_ref,        # (H, 2H)     [w_hw[:, :H] | w_hi]   (fused prev_s weights)
    w_c_ref,        # (2H, 2H)    [w_cw[:, :H] | w_ci]   (fused ctx weights)
    dec_h_ref,      # out: (T, B, H)
    enc_scr,        # scratch VMEM (B, S, H): hoisted encoder projection
):
    B, S, H2 = hiddens_ref.shape
    H = content_ref.shape[1]
    T = dec_h_ref.shape[0]

    # ---- loop-invariant: encoder projection, computed exactly once ----
    enc_scr[...] = (
        jnp.dot(hiddens_ref[...].reshape(B * S, H2), w_enc_ref[...],
                preferred_element_type=jnp.float32)
        + b_ep_ref[...]
    ).reshape(B, S, H)

    def step(i, prev_s):
        # -------------- Attention (only prev_s-dependent work) --------------
        prev_proj = jnp.dot(prev_s, w_prev_ref[...],
                            preferred_element_type=jnp.float32)        # (B, H)
        h = jnp.tanh(enc_scr[...] + prev_proj[:, None, :])             # (B, S, H)
        # linear(H -> 1) as a VPU multiply + lane reduce.
        # NOTE: the original code calls legacy F.softmax without `dim`; we
        # implement the attention intent: softmax over the sequence axis.
        # (b_att is a constant shift so it cannot change the softmax result.)
        scores = jnp.sum(h * w_att_ref[...], axis=2) + b_att_ref[...]  # (B, S)
        m = jnp.max(scores, axis=1, keepdims=True)
        e = jnp.exp(scores - m)
        alpha = e / jnp.sum(e, axis=1, keepdims=True)                  # (B, S)
        ctx = jnp.sum(alpha[:, :, None] * hiddens_ref[...], axis=1)    # (B, 2H)

        # -------------- DecoderCell (fused prev_s / ctx matmuls) ------------
        pre = (jnp.dot(prev_s, w_h_ref[...], preferred_element_type=jnp.float32)
               + jnp.dot(ctx, w_c_ref[...], preferred_element_type=jnp.float32))
        reset = jax.nn.sigmoid(pre[:, :H] + tgt_gate_ref[i])
        s_tilde = jnp.tanh(pre[:, H:] + tgt_tilde_ref[i])
        # (the update_gate of the original model is computed-and-discarded, so
        #  its weight columns were dropped in the wrapper: bit-identical result)
        new_s = (1.0 - reset) * prev_s + reset * s_tilde

        dec_h_ref[i] = new_s
        return new_s

    lax.fori_loop(0, T, step, content_ref[...])


# -----------------------------------------------------------------------------
# Kernel 2: vocab projection as a tiled GEMM with lane-dense output tiles.
#   out[t, b, :] = dec_h[t, b] @ w_d2w + (1.5*b_d2w + 0.5 * sentiment[b] @ w_d2w)
# -----------------------------------------------------------------------------
def project_kernel(dec_h_ref, w_ref, bias_ref, out_ref):
    tt, B, H = dec_h_ref.shape
    tn = w_ref.shape[1]
    x = dec_h_ref[...].reshape(tt * B, H)
    y = jnp.dot(x, w_ref[...], preferred_element_type=jnp.float32)    # (tt*B, tn)
    out_ref[...] = y.reshape(tt, B, tn) + bias_ref[...][None, :, :]


def _round_up(x, m):
    return (x + m - 1) // m * m


# -----------------------------------------------------------------------------
# Wrapper
# -----------------------------------------------------------------------------
def decoder_forward(params, content, sentiment, hiddens, target_ids):
    f32 = jnp.float32
    B, S, H2 = hiddens.shape
    H = content.shape[1]
    T = target_ids.shape[1]
    V = params['w_d2w'].shape[1]
    E = params['embed'].shape[1]

    # ---- glue: embedding lookup + loop-invariant target projections (one
    #      batched (T*B, E) GEMM each, hoisted out of the serial loop) ----
    emb = jnp.take(params['embed'], target_ids, axis=0)               # (B, T, E)
    tgt = jnp.transpose(emb, (1, 0, 2)).reshape(T * B, E).astype(f32)

    b_gate = (params['b_iw'][:, :H] + params['b_hw'][:, :H] + params['b_cw'][:, :H])
    b_tilde = params['b_ii'] + params['b_hi'] + params['b_ci']
    tgt_gate = (tgt @ params['w_iw'][:, :H] + b_gate).reshape(T, B, H)
    tgt_tilde = (tgt @ params['w_ii'] + b_tilde).reshape(T, B, H)

    # ---- fused recurrent weights (unused update-gate columns dropped) ----
    w_h_fused = jnp.concatenate([params['w_hw'][:, :H], params['w_hi']], axis=1)
    w_c_fused = jnp.concatenate([params['w_cw'][:, :H], params['w_ci']], axis=1)
    b_enc_prev = params['b_enc'] + params['b_prev']
    w_att_row = params['w_att'].T                                     # (1, H)

    vmem = pl.BlockSpec(memory_space=pltpu.MemorySpace.VMEM)
    rec_inputs = (hiddens.astype(f32), content.astype(f32), tgt_gate, tgt_tilde,
                  params['w_enc'], b_enc_prev, params['w_prev'],
                  w_att_row, params['b_att'], w_h_fused, w_c_fused)

    dec_h = pl.pallas_call(
        recurrence_kernel,
        out_shape=jax.ShapeDtypeStruct((T, B, H), f32),
        in_specs=[vmem] * len(rec_inputs),
        out_specs=vmem,
        scratch_shapes=[pltpu.VMEM((B, S, H), f32)],
        compiler_params=pltpu.CompilerParams(vmem_limit_bytes=48 * 1024 * 1024),
    )(*rec_inputs)

    # ---- vocab projection: one tiled (T*B, H) x (H, V) GEMM ----
    V_pad = _round_up(V, 128)                      # lane-dense, unmasked stores
    w_d2w = jnp.pad(params['w_d2w'], ((0, 0), (0, V_pad - V))).astype(f32)
    b_d2w = jnp.pad(params['b_d2w'], ((0, 0), (0, V_pad - V))).astype(f32)
    # step-invariant style term, computed ONCE and folded into a per-row bias
    style_bias = 1.5 * b_d2w + 0.5 * (sentiment.astype(f32) @ w_d2w)  # (B, V_pad)

    tt = max(1, min(T, 256 // max(B, 1)))          # ~256 MXU rows per tile
    T_pad = _round_up(T, tt)
    dec_h_p = jnp.pad(dec_h, ((0, T_pad - T), (0, 0), (0, 0)))
    tn = 512 if V_pad % 512 == 0 else (256 if V_pad % 256 == 0 else 128)

    out_tbv = pl.pallas_call(
        project_kernel,
        out_shape=jax.ShapeDtypeStruct((T_pad, B, V_pad), f32),
        grid=(T_pad // tt, V_pad // tn),
        in_specs=[pl.BlockSpec((tt, B, H), lambda r, c: (r, 0, 0)),
                  pl.BlockSpec((H, tn), lambda r, c: (0, c)),
                  pl.BlockSpec((B, tn), lambda r, c: (0, c))],
        out_specs=pl.BlockSpec((tt, B, tn), lambda r, c: (r, 0, c)),
        compiler_params=pltpu.CompilerParams(
            dimension_semantics=("parallel", "parallel"),   # megacore on v7x
            vmem_limit_bytes=48 * 1024 * 1024),
    )(dec_h_p, w_d2w, style_bias)

    return jnp.transpose(out_tbv[:T, :, :V], (1, 0, 2))     # (B, T, V)


# -----------------------------------------------------------------------------
# Deterministic parameter init (weights stored as (in, out); y = x @ W + b)
# -----------------------------------------------------------------------------
def init_params(key, vocab_size, embed_dim, hidden_dim):
    H, E, V = hidden_dim, embed_dim, vocab_size
    names_shapes = [
        ('enc', 2 * H, H), ('prev', H, H), ('att', H, 1),
        ('iw', E, 2 * H), ('hw', H, 2 * H), ('cw', 2 * H, 2 * H),
        ('ii', E, H), ('hi', H, H), ('ci', 2 * H, H),
        ('d2w', H, V),
    ]
    params = {}
    keys = jax.random.split(key, 2 * len(names_shapes))
    for idx, (name, fi, fo) in enumerate(names_shapes):
        params['w_' + name] = jax.random.normal(keys[2 * idx], (fi, fo), jnp.float32) * 0.1
        params['b_' + name] = jax.random.normal(keys[2 * idx + 1], (1, fo), jnp.float32) * 0.1
    return params
    # TODO(synk): combine_hidden / inference (is_train=False) branch with topk
    # feedback is not part of the train forward path and is not implemented here.


# -----------------------------------------------------------------------------
# Pure-JAX reference (mirror of the PyTorch forward, train path)
# -----------------------------------------------------------------------------
def reference_forward(params, content, sentiment, hiddens, target_ids):
    emb = jnp.take(params['embed'], target_ids, axis=0)   # (B, T, E)
    B, T, _ = emb.shape
    H = content.shape[1]
    prev_s = content
    dec_h = []
    for i in range(T):
        enc = jnp.einsum('bsk,kh->bsh', hiddens, params['w_enc']) + params['b_enc']
        pp = prev_s @ params['w_prev'] + params['b_prev']
        h = jnp.tanh(enc + pp[:, None, :])
        sc = jnp.einsum('bsh,h->bs', h, params['w_att'][:, 0]) + params['b_att'][0, 0]
        alpha = jax.nn.softmax(sc, axis=1)
        ctx = jnp.einsum('bs,bsk->bk', alpha, hiddens)
        trg = emb[:, i]
        gates = (trg @ params['w_iw'] + params['b_iw']
                 + prev_s @ params['w_hw'] + params['b_hw']
                 + ctx @ params['w_cw'] + params['b_cw'])
        reset = jax.nn.sigmoid(gates[:, :H])
        st = jnp.tanh(trg @ params['w_ii'] + params['b_ii']
                      + prev_s @ params['w_hi'] + params['b_hi']
                      + ctx @ params['w_ci'] + params['b_ci'])
        prev_s = (1.0 - reset) * prev_s + reset * st
        dec_h.append(prev_s)
    dec_h = jnp.stack(dec_h, axis=1)                                   # (B, T, H)
    out = dec_h @ params['w_d2w'] + params['b_d2w']
    style = sentiment @ params['w_d2w'] + params['b_d2w']
    return out + 0.5 * style[:, None, :]


if __name__ == "__main__":
    key = jax.random.PRNGKey(0)
    B, S, T = 2, 8, 4
    E, H, V = 16, 32, 64

    k_params, k_emb, k_c, k_s, k_h, k_t = jax.random.split(key, 6)
    params = init_params(k_params, V, E, H)
    params['embed'] = jax.random.normal(k_emb, (V, E), jnp.float32) * 0.1  # pre_embedding

    content = jax.random.normal(k_c, (B, H), jnp.float32)         # initial prev_s
    sentiment = jax.random.normal(k_s, (B, H), jnp.float32)
    hiddens = jax.random.normal(k_h, (B, S, 2 * H), jnp.float32)  # encoder states (B, S, 2H)
    target = jax.random.randint(k_t, (B, T), 0, V)                # target token ids

    out = decoder_forward(params, content, sentiment, hiddens, target)
    out = jax.block_until_ready(out)
    assert out.shape == (B, T, V), out.shape

    ref = reference_forward(params, content, sentiment, hiddens, target)
    assert bool(jnp.allclose(out, ref, atol=2e-3, rtol=2e-3)), \
        float(jnp.max(jnp.abs(out - ref)))

    print("KERNEL_OK")
</pallas_src>

<mosaic_0001>
module attributes {stable_mosaic.version = 11 : i64} {
  func.func @recurrence_kernel(%arg0: memref<2x8x64xf32, #tpu.memory_space<vmem>>, %arg1: memref<2x32xf32, #tpu.memory_space<vmem>>, %arg2: memref<4x2x32xf32, #tpu.memory_space<vmem>>, %arg3: memref<4x2x32xf32, #tpu.memory_space<vmem>>, %arg4: memref<64x32xf32, #tpu.memory_space<vmem>>, %arg5: memref<1x32xf32, #tpu.memory_space<vmem>>, %arg6: memref<32x32xf32, #tpu.memory_space<vmem>>, %arg7: memref<1x32xf32, #tpu.memory_space<vmem>>, %arg8: memref<1x1xf32, #tpu.memory_space<vmem>>, %arg9: memref<32x64xf32, #tpu.memory_space<vmem>>, %arg10: memref<64x64xf32, #tpu.memory_space<vmem>>, %arg11: memref<4x2x32xf32, #tpu.memory_space<vmem>>, %arg12: memref<2x8x32xf32, #tpu.memory_space<vmem>>) attributes {dimension_semantics = [], scalar_prefetch = 0 : i64, scratch_operands = 1 : i64, tpu.core_type = #tpu.core_type<tc>} {
    %c0 = arith.constant 0 : index
    %c0_0 = arith.constant 0 : index
    %c0_1 = arith.constant 0 : index
    %0 = vector.load %arg0[%c0, %c0_0, %c0_1] : memref<2x8x64xf32, #tpu.memory_space<vmem>>, vector<2x8x64xf32>
    %1 = vector.shape_cast %0 : vector<2x8x64xf32> to vector<16x64xf32>
    %c0_2 = arith.constant 0 : index
    %c0_3 = arith.constant 0 : index
    %2 = vector.load %arg4[%c0_2, %c0_3] : memref<64x32xf32, #tpu.memory_space<vmem>>, vector<64x32xf32>
    %cst = arith.constant dense<0.000000e+00> : vector<16x32xf32>
    %3 = tpu.matmul %1, %2, %cst {dimension_numbers = #tpu.dot_dimension_numbers<[1], [0], [0], [1], [0, 0, 1, 1], [], []>} : vector<16x64xf32>, vector<64x32xf32>, vector<16x32xf32> -> vector<16x32xf32>
    %c0_4 = arith.constant 0 : index
    %c0_5 = arith.constant 0 : index
    %4 = vector.load %arg5[%c0_4, %c0_5] : memref<1x32xf32, #tpu.memory_space<vmem>>, vector<1x32xf32>
    %5 = vector.broadcast %4 : vector<1x32xf32> to vector<16x32xf32>
    %6 = arith.addf %3, %5 : vector<16x32xf32>
    %7 = vector.shape_cast %6 : vector<16x32xf32> to vector<2x8x32xf32>
    %c0_6 = arith.constant 0 : index
    %c0_7 = arith.constant 0 : index
    %c0_8 = arith.constant 0 : index
    %8 = vector.load %arg12[%c0_6, %c0_7, %c0_8] : memref<2x8x32xf32, #tpu.memory_space<vmem>>, vector<2x8x32xf32>
    tpu.vector_store %arg12[%c0_6, %c0_7, %c0_8], %7 {strides = array<i32>} : memref<2x8x32xf32, #tpu.memory_space<vmem>>, vector<2x8x32xf32>,
    %c0_9 = arith.constant 0 : index
    %c0_10 = arith.constant 0 : index
    %9 = vector.load %arg1[%c0_9, %c0_10] : memref<2x32xf32, #tpu.memory_space<vmem>>, vector<2x32xf32>
    %c0_i32 = arith.constant 0 : i32
    %c4_i32 = arith.constant 4 : i32
    %10 = arith.addi %c0_i32, %c4_i32 : i32
    %c1_i32 = arith.constant 1 : i32
    %11 = scf.for %arg13 = %c0_i32 to %10 step %c1_i32 iter_args(%arg14 = %9) -> (vector<2x32xf32>)  : i32 {
      %c0_12 = arith.constant 0 : index
      %c0_13 = arith.constant 0 : index
      %12 = vector.load %arg6[%c0_12, %c0_13] : memref<32x32xf32, #tpu.memory_space<vmem>>, vector<32x32xf32>
      %cst_14 = arith.constant dense<0.000000e+00> : vector<2x32xf32>
      %13 = tpu.matmul %arg14, %12, %cst_14 {dimension_numbers = #tpu.dot_dimension_numbers<[1], [0], [0], [1], [0, 0, 1, 1], [], []>} : vector<2x32xf32>, vector<32x32xf32>, vector<2x32xf32> -> vector<2x32xf32>
      %c0_15 = arith.constant 0 : index
      %c0_16 = arith.constant 0 : index
      %c0_17 = arith.constant 0 : index
      %14 = vector.load %arg12[%c0_15, %c0_16, %c0_17] : memref<2x8x32xf32, #tpu.memory_space<vmem>>, vector<2x8x32xf32>
      %15 = vector.shape_cast %13 : vector<2x32xf32> to vector<2x1x32xf32>
      %16 = vector.broadcast %15 : vector<2x1x32xf32> to vector<2x8x32xf32>
      %17 = arith.addf %14, %16 : vector<2x8x32xf32>
      %18 = math.tanh %17 : vector<2x8x32xf32>
      %c0_18 = arith.constant 0 : index
      %c0_19 = arith.constant 0 : index
      %19 = vector.load %arg7[%c0_18, %c0_19] : memref<1x32xf32, #tpu.memory_space<vmem>>, vector<1x32xf32>
      %20 = vector.shape_cast %19 : vector<1x32xf32> to vector<1x1x32xf32>
      %21 = vector.broadcast %20 : vector<1x1x32xf32> to vector<2x8x32xf32>
      %22 = arith.mulf %18, %21 : vector<2x8x32xf32>
      %cst_20 = arith.constant dense<0.000000e+00> : vector<2x8xf32>
      %23 = vector.multi_reduction <add>, %22, %cst_20 [2] : vector<2x8x32xf32> to vector<2x8xf32>
      %c0_21 = arith.constant 0 : index
      %c0_22 = arith.constant 0 : index
      %24 = vector.load %arg8[%c0_21, %c0_22] : memref<1x1xf32, #tpu.memory_space<vmem>>, vector<1x1xf32>
      %25 = vector.broadcast %24 : vector<1x1xf32> to vector<2x8xf32>
      %26 = arith.addf %23, %25 : vector<2x8xf32>
      %cst_23 = arith.constant dense<0xFF800000> : vector<2xf32>
      %27 = vector.multi_reduction <maximumf>, %26, %cst_23 [1] : vector<2x8xf32> to vector<2xf32>
      %28 = vector.shape_cast %27 : vector<2xf32> to vector<2x1xf32>
      %29 = vector.broadcast %28 : vector<2x1xf32> to vector<2x8xf32>
      %30 = arith.subf %26, %29 : vector<2x8xf32>
      %31 = math.exp %30 : vector<2x8xf32>
      %cst_24 = arith.constant dense<0.000000e+00> : vector<2xf32>
      %32 = vector.multi_reduction <add>, %31, %cst_24 [1] : vector<2x8xf32> to vector<2xf32>
      %33 = vector.shape_cast %32 : vector<2xf32> to vector<2x1xf32>
      %34 = vector.broadcast %33 : vector<2x1xf32> to vector<2x8xf32>
      %35 = arith.divf %31, %34 : vector<2x8xf32>
      %36 = vector.shape_cast %35 : vector<2x8xf32> to vector<2x8x1xf32>
      %c0_25 = arith.constant 0 : index
      %c0_26 = arith.constant 0 : index
      %c0_27 = arith.constant 0 : index
      %37 = vector.load %arg0[%c0_25, %c0_26, %c0_27] : memref<2x8x64xf32, #tpu.memory_space<vmem>>, vector<2x8x64xf32>
      %38 = vector.broadcast %36 : vector<2x8x1xf32> to vector<2x8x64xf32>
      %39 = arith.mulf %38, %37 : vector<2x8x64xf32>
      %cst_28 = arith.constant dense<0.000000e+00> : vector<2x64xf32>
      %40 = vector.multi_reduction <add>, %39, %cst_28 [1] : vector<2x8x64xf32> to vector<2x64xf32>
      %c0_29 = arith.constant 0 : index
      %c0_30 = arith.constant 0 : index
      %41 = vector.load %arg9[%c0_29, %c0_30] : memref<32x64xf32, #tpu.memory_space<vmem>>, vector<32x64xf32>
      %cst_31 = arith.constant dense<0.000000e+00> : vector<2x64xf32>
      %42 = tpu.matmul %arg14, %41, %cst_31 {dimension_numbers = #tpu.dot_dimension_numbers<[1], [0], [0], [1], [0, 0, 1, 1], [], []>} : vector<2x32xf32>, vector<32x64xf32>, vector<2x64xf32> -> vector<2x64xf32>
      %c0_32 = arith.constant 0 : index
      %c0_33 = arith.constant 0 : index
      %43 = vector.load %arg10[%c0_32, %c0_33] : memref<64x64xf32, #tpu.memory_space<vmem>>, vector<64x64xf32>
      %cst_34 = arith.constant dense<0.000000e+00> : vector<2x64xf32>
      %44 = tpu.matmul %40, %43, %cst_34 {dimension_numbers = #tpu.dot_dimension_numbers<[1], [0], [0], [1], [0, 0, 1, 1], [], []>} : vector<2x64xf32>, vector<64x64xf32>, vector<2x64xf32> -> vector<2x64xf32>
      %45 = arith.addf %42, %44 : vector<2x64xf32>
      %46 = vector.extract_strided_slice %45 {offsets = [0, 0], sizes = [2, 32], strides = [1, 1]} : vector<2x64xf32> to vector<2x32xf32>
      %47 = arith.index_cast %arg13 : i32 to index
      %c0_35 = arith.constant 0 : index
      %c0_36 = arith.constant 0 : index
      %48 = vector.load %arg2[%47, %c0_35, %c0_36] : memref<4x2x32xf32, #tpu.memory_space<vmem>>, vector<1x2x32xf32>
      %49 = vector.shape_cast %48 : vector<1x2x32xf32> to vector<2x32xf32>
      %50 = arith.addf %46, %49 : vector<2x32xf32>
      %51 = arith.negf %50 : vector<2x32xf32>
      %52 = math.exp %51 : vector<2x32xf32>
      %cst_37 = arith.constant 1.000000e+00 : f32
      %53 = vector.broadcast %cst_37 : f32 to vector<2x32xf32>
      %54 = arith.addf %53, %52 : vector<2x32xf32>
      %55 = arith.divf %53, %54 : vector<2x32xf32>
      %56 = vector.extract_strided_slice %45 {offsets = [0, 32], sizes = [2, 32], strides = [1, 1]} : vector<2x64xf32> to vector<2x32xf32>
      %57 = arith.index_cast %arg13 : i32 to index
      %c0_38 = arith.constant 0 : index
      %c0_39 = arith.constant 0 : index
      %58 = vector.load %arg3[%57, %c0_38, %c0_39] : memref<4x2x32xf32, #tpu.memory_space<vmem>>, vector<1x2x32xf32>
      %59 = vector.shape_cast %58 : vector<1x2x32xf32> to vector<2x32xf32>
      %60 = arith.addf %56, %59 : vector<2x32xf32>
      %61 = math.tanh %60 : vector<2x32xf32>
      %cst_40 = arith.constant 1.000000e+00 : f32
      %62 = vector.broadcast %cst_40 : f32 to vector<2x32xf32>
      %63 = arith.subf %62, %55 : vector<2x32xf32>
      %64 = arith.mulf %63, %arg14 : vector<2x32xf32>
      %65 = arith.mulf %55, %61 : vector<2x32xf32>
      %66 = arith.addf %64, %65 : vector<2x32xf32>
      %67 = arith.index_cast %arg13 : i32 to index
      %c0_41 = arith.constant 0 : index
      %c0_42 = arith.constant 0 : index
      %68 = vector.load %arg11[%67, %c0_41, %c0_42] : memref<4x2x32xf32, #tpu.memory_space<vmem>>, vector<1x2x32xf32>
      %69 = vector.shape_cast %68 : vector<1x2x32xf32> to vector<2x32xf32>
      %70 = vector.shape_cast %66 : vector<2x32xf32> to vector<1x2x32xf32>
      tpu.vector_store %arg11[%67, %c0_41, %c0_42], %70 {strides = array<i32>} : memref<4x2x32xf32, #tpu.memory_space<vmem>>, vector<1x2x32xf32>,
      scf.yield %66 : vector<2x32xf32>
    }
    %c4_i32_11 = arith.constant 4 : i32
    return
  }
}

</mosaic_0001>

<llo_original>
// kernel: tpu_custom_call.1
$region0: #{tpu_custom_call.1}
  #allocation0 [shape = 'u32[]', space=smem, size = 0x4, offset = 0x4, fixed_abs, tag = 'smem constant byte address 0x4 - core index']
  #allocation1 [shape = 'u32[72,128]{1,0:T(1,128)}', space=vmem, size = 0x9000, scoped, tag = 'internal scratch']
  #allocation2 [shape = 'f32[2,8,32]{2,1,0:T(8,128)}', space=vmem, size = 0x2000, scoped, tag = 'scratch operand']
  #allocation3 [shape = 'f32[1,1]{1,0:T(1,128)S(1)}', space=vmem, size = 0x200, scoped, tag = 'scoped memory for tpu_custom_call.1']
  %s0 = inlined_call_operand.hbm [shape: f32[2,8,64], index: 0, kind: input, shape index: {}]
  %s1 = inlined_call_operand.vmem [shape: f32[2,32], index: 1, kind: input, shape index: {}]
  %s2 = inlined_call_operand.vmem [shape: f32[4,2,32], index: 2, kind: input, shape index: {}]
  %s3 = inlined_call_operand.hbm [shape: f32[4,2,32], index: 3, kind: input, shape index: {}]
  %s4 = inlined_call_operand.vmem [shape: f32[64,32], index: 4, kind: input, shape index: {}]
  %s5 = inlined_call_operand.hbm [shape: f32[1,32], index: 5, kind: input, shape index: {}]
  %s6 = inlined_call_operand.vmem [shape: f32[32,32], index: 6, kind: input, shape index: {}]
  %s7 = inlined_call_operand.hbm [shape: f32[1,32], index: 7, kind: input, shape index: {}]
  %s8 = inlined_call_operand.<no memory space> [shape: f32[1,1], index: 8, kind: input, shape index: {}]
  %s9 = inlined_call_operand.hbm [shape: f32[32,64], index: 9, kind: input, shape index: {}]
  %s10 = inlined_call_operand.vmem [shape: f32[64,64], index: 10, kind: input, shape index: {}]
  %s11 = inlined_call_operand.hbm [shape: f32[4,2,32], index: 11, kind: output, shape index: {}]
  %s12 = sld [smem:[#allocation0]]
  $region81: #{tpu_custom_call.1} parent=0
    _
  %s14 = ssub.s32 1, %s12
  %s15 = scalar_select 0, %s14, %s12
  %v16 = vstv %s8
  %17 = vst [vmem:[#allocation3] sm:$0x1] %v16
  $region1: #{tpu_custom_call.1} parent=0
    #allocation4 [shape = 'u8[8192]{0}', space=vmem, size = 0x2000, scoped, tag = 'input window, operand 0, single buffered']
    #allocation5 [shape = 's32[1]{0}', space=sflag, size = 0x4, scoped, tag = 'scoped memory for tpu_custom_call.1']
    #allocation6 [shape = 's32[1]{0}', space=sflag, size = 0x4, scoped, tag = 'scoped memory for tpu_custom_call.1']
    #allocation7 [shape = 'u8[4096]{0}', space=vmem, size = 0x1000, scoped, tag = 'input window, operand 3, single buffered']
    #allocation8 [shape = 's32[1]{0}', space=sflag, size = 0x4, scoped, tag = 'scoped memory for tpu_custom_call.1']
    #allocation9 [shape = 'u8[512]{0}', space=vmem, size = 0x400, scoped, tag = 'input window, operand 5, single buffered']
    #allocation10 [shape = 'u8[512]{0}', space=vmem, size = 0x400, scoped, tag = 'input window, operand 7, single buffered']
    #allocation11 [shape = 's32[1]{0}', space=sflag, size = 0x4, scoped, tag = 'scoped memory for tpu_custom_call.1']
    #allocation12 [shape = 'u8[16384]{0}', space=vmem, size = 0x4000, scoped, tag = 'input window, operand 9, single buffered']
    #allocation13 [shape = 'u8[4096]{0}', space=vmem, size = 0x1000, scoped, tag = 'output window, operand 0, single buffered']
    %18 = vsyncpa [#allocation5], 0
    %19 = vsyncpa [#allocation8], 0
    %20 = vsyncpa [#allocation11], 0
    %21 = vsyncpa [#allocation6], 0
    // Predicated region
    $region2: #{tpu_custom_call.1} parent=1 // pred_check
      _
    $region3: #{tpu_custom_call.1} parent=1 // pred_check_branch
      %23 = sbr.rel (0) target = $region5
    $region4: #{tpu_custom_call.1} parent=1 // pred_region
      %25 = vsyncadd [#allocation5], 0
      %s26 = sshll.u32 %s0, 4
      %s27 = int_to_ptr.hbm [resolvable:$true] %s26
      %s28 = sshll.u32 [#allocation4], 4
      %s29 = int_to_ptr.vmem [resolvable:$true] %s28
      %34 = dma.hbm_to_vmem [thread:$0]  %s27, 256, %s29, [#allocation5], 128, 128, 8
    $region5: #{tpu_custom_call.1} parent=1 // pred_fallthru
      _
    // Predicated region
    $region6: #{tpu_custom_call.1} parent=1 // pred_check
      _
    $region7: #{tpu_custom_call.1} parent=1 // pred_check_branch
      %36 = sbr.rel (0) target = $region9
    $region8: #{tpu_custom_call.1} parent=1 // pred_region
      _
    $region9: #{tpu_custom_call.1} parent=1 // pred_fallthru
      _
    // Predicated region
    $region10: #{tpu_custom_call.1} parent=1 // pred_check
      _
    $region11: #{tpu_custom_call.1} parent=1 // pred_check_branch
      %38 = sbr.rel (0) target = $region13
    $region12: #{tpu_custom_call.1} parent=1 // pred_region
      _
    $region13: #{tpu_custom_call.1} parent=1 // pred_fallthru
      _
    // Predicated region
    $region14: #{tpu_custom_call.1} parent=1 // pred_check
      _
    $region15: #{tpu_custom_call.1} parent=1 // pred_check_branch
      %40 = sbr.rel (0) target = $region17
    $region16: #{tpu_custom_call.1} parent=1 // pred_region
      %42 = vsyncadd [#allocation8], 0
      %s43 = sshll.u32 %s3, 4
      %s44 = int_to_ptr.hbm [resolvable:$true] %s43
      %s45 = sshll.u32 [#allocation7], 4
      %s46 = int_to_ptr.vmem [resolvable:$true] %s45
      %51 = dma.hbm_to_vmem [thread:$0]  %s44, 128, %s46, [#allocation8], 32, 32, 2
    $region17: #{tpu_custom_call.1} parent=1 // pred_fallthru
      _
    // Predicated region
    $region18: #{tpu_custom_call.1} parent=1 // pred_check
      _
    $region19: #{tpu_custom_call.1} parent=1 // pred_check_branch
      %53 = sbr.rel (0) target = $region21
    $region20: #{tpu_custom_call.1} parent=1 // pred_region
      _
    $region21: #{tpu_custom_call.1} parent=1 // pred_fallthru
      _
    // Predicated region
    $region22: #{tpu_custom_call.1} parent=1 // pred_check
      _
    $region23: #{tpu_custom_call.1} parent=1 // pred_check_branch
      %55 = sbr.rel (0) target = $region25
    $region24: #{tpu_custom_call.1} parent=1 // pred_region
      %57 = vsyncadd [#allocation8], 0
      %s59 = sshll.u32 %s5, 4
      %s60 = int_to_ptr.hbm [resolvable:$true] %s59
      %s61 = sshll.u32 [#allocation9], 4
      %s62 = int_to_ptr.vmem [resolvable:$true] %s61
      %64 = dma.hbm_to_vmem [thread:$0]  %s60, 16, %s62, [#allocation8]
    $region25: #{tpu_custom_call.1} parent=1 // pred_fallthru
      _
    // Predicated region
    $region26: #{tpu_custom_call.1} parent=1 // pred_check
      _
    $region27: #{tpu_custom_call.1} parent=1 // pred_check_branch
      %66 = sbr.rel (0) target = $region29
    $region28: #{tpu_custom_call.1} parent=1 // pred_region
      _
    $region29: #{tpu_custom_call.1} parent=1 // pred_fallthru
      _
    // Predicated region
    $region30: #{tpu_custom_call.1} parent=1 // pred_check
      _
    $region31: #{tpu_custom_call.1} parent=1 // pred_check_branch
      %68 = sbr.rel (0) target = $region33
    $region32: #{tpu_custom_call.1} parent=1 // pred_region
      %70 = vsyncadd [#allocation11], 0
      %s72 = sshll.u32 %s7, 4
      %s73 = int_to_ptr.hbm [resolvable:$true] %s72
      %s74 = sshll.u32 [#allocation10], 4
      %s75 = int_to_ptr.vmem [resolvable:$true] %s74
      %77 = dma.hbm_to_vmem [thread:$0]  %s73, 16, %s75, [#allocation11]
    $region33: #{tpu_custom_call.1} parent=1 // pred_fallthru
      _
    // Predicated region
    $region34: #{tpu_custom_call.1} parent=1 // pred_check
      _
    $region35: #{tpu_custom_call.1} parent=1 // pred_check_branch
      %79 = sbr.rel (0) target = $region37
    $region36: #{tpu_custom_call.1} parent=1 // pred_region
      _
    $region37: #{tpu_custom_call.1} parent=1 // pred_fallthru
      _
    // Predicated region
    $region38: #{tpu_custom_call.1} parent=1 // pred_check
      _
    $region39: #{tpu_custom_call.1} parent=1 // pred_check_branch
      %81 = sbr.rel (0) target = $region41
    $region40: #{tpu_custom_call.1} parent=1 // pred_region
      %83 = vsyncadd [#allocation11], 0
      %s84 = sshll.u32 %s9, 4
      %s85 = int_to_ptr.hbm [resolvable:$true] %s84
      %s86 = sshll.u32 [#allocation12], 4
      %s87 = int_to_ptr.vmem [resolvable:$true] %s86
      %92 = dma.hbm_to_vmem [thread:$0]  %s85, 512, %s87, [#allocation11], 128, 128, 8
    $region41: #{tpu_custom_call.1} parent=1 // pred_fallthru
      _
    // Predicated region
    $region42: #{tpu_custom_call.1} parent=1 // pred_check
      _
    $region43: #{tpu_custom_call.1} parent=1 // pred_check_branch
      %94 = sbr.rel (0) target = $region45
    $region44: #{tpu_custom_call.1} parent=1 // pred_region
      _
    $region45: #{tpu_custom_call.1} parent=1 // pred_fallthru
      _
    // Predicated region
    $region46: #{tpu_custom_call.1} parent=1 // pred_check
      _
    $region47: #{tpu_custom_call.1} parent=1 // pred_check_branch
      %96 = sbr.rel (0) target = $region49
    $region48: #{tpu_custom_call.1} parent=1 // pred_region
      %98 = dma.done [#allocation5], 256
    $region49: #{tpu_custom_call.1} parent=1 // pred_fallthru
      _
    // Predicated region
    $region50: #{tpu_custom_call.1} parent=1 // pred_check
      _
    $region51: #{tpu_custom_call.1} parent=1 // pred_check_branch
      %100 = sbr.rel (0) target = $region53
    $region52: #{tpu_custom_call.1} parent=1 // pred_region
      %102 = dma.done [#allocation8], 128
    $region53: #{tpu_custom_call.1} parent=1 // pred_fallthru
      _
    // Predicated region
    $region54: #{tpu_custom_call.1} parent=1 // pred_check
      _
    $region55: #{tpu_custom_call.1} parent=1 // pred_check_branch
      %104 = sbr.rel (0) target = $region57
    $region56: #{tpu_custom_call.1} parent=1 // pred_region
      %106 = dma.done [#allocation8], 16
    $region57: #{tpu_custom_call.1} parent=1 // pred_fallthru
      _
    // Predicated region
    $region58: #{tpu_custom_call.1} parent=1 // pred_check
      _
    $region59: #{tpu_custom_call.1} parent=1 // pred_check_branch
      %108 = sbr.rel (0) target = $region61
    $region60: #{tpu_custom_call.1} parent=1 // pred_region
      %110 = dma.done [#allocation11], 16
    $region61: #{tpu_custom_call.1} parent=1 // pred_fallthru
      _
    // Predicated region
    $region62: #{tpu_custom_call.1} parent=1 // pred_check
      _
    $region63: #{tpu_custom_call.1} parent=1 // pred_check_branch
      %112 = sbr.rel (0) target = $region65
    $region64: #{tpu_custom_call.1} parent=1 // pred_region
      %114 = dma.done [#allocation11], 512
    $region65: #{tpu_custom_call.1} parent=1 // pred_fallthru
      _
    %v115 = vld [vmem:[#allocation4] sm:$0xff]
    %v116 = vld [vmem:[#allocation4 + $0x8] sm:$0xff]
    %v117 = vld [vmem:[%s4] sm:$0xff]
    %v118 = vld [vmem:[%s4 + $0x8] sm:$0xff]
    %v119 = vld [vmem:[%s4 + $0x10] sm:$0xff]
    %v120 = vld [vmem:[%s4 + $0x18] sm:$0xff]
    %v121 = vld [vmem:[%s4 + $0x20] sm:$0xff]
    %v122 = vld [vmem:[%s4 + $0x28] sm:$0xff]
    %v123 = vld [vmem:[%s4 + $0x30] sm:$0xff]
    %v124 = vld [vmem:[%s4 + $0x38] sm:$0xff]
    %v125 = vld [vmem:[#allocation9] sm:$0x1]
    %v127 = vperm.slane %v125, 0
    %vm129 = vcmask 523264
    %v131 = vsel %vm129, %v115, 0
    %v134 = vsel %vm129, %v116, 0
    %136 = vmatpush.msra.mxu0 0.0
    %137 = vmatpush.msra.mxu0 0.0
    %138 = vmatpush.msra.mxu0 0.0
    %139 = vmatpush.msra.mxu0 0.0
    %140 = vmatpush.msra.mxu0 0.0
    %141 = vmatpush.msra.mxu0 0.0
    %142 = vmatpush.msra.mxu0 0.0
    %143 = vmatpush.msra.mxu0 0.0
    %144 = vmatpush.msra.mxu0 %v124
    %145 = vmatpush.msra.mxu0 %v123
    %146 = vmatpush.msra.mxu0 %v122
    %147 = vmatpush.msra.mxu0 %v121
    %148 = vmatpush.msra.mxu0 %v120
    %149 = vmatpush.msra.mxu0 %v119
    %150 = vmatpush.msra.mxu0 %v118
    %151 = vmatpush.msra.mxu0 %v117
    %152 = vmatmul.f32.gmra.mxu0 %v131
    %v153 = vpop.f32.mrf.mxu0
    %v154 = vadd.f32 %v127, %v153
    %155 = vmatmul.f32.gmra.mxu0 %v134
    %v156 = vpop.f32.mrf.mxu0
    %v157 = vadd.f32 %v127, %v156
    %158 = vdwg.mxu0
    %vm159 = vcmask 261120
    %160 = vst.msk [vmem:[#allocation2] sm:$0xff] %vm159, %v154
    %161 = vst.msk [vmem:[#allocation2 + $0x8] sm:$0xff] %vm159, %v157
    %v162 = vld [vmem:[%s1] sm:$0x3]
    loop: start=0, step=1, limit=4
    $region66: #{tpu_custom_call.1} parent=1 // loop_pre_header
      _
    $region67: #{tpu_custom_call.1} parent=1 // loop_header
      %s164 = sphi 0, %s168
      %p165 = scmp.ge.s32.totalorder %s164, 4
      %v169 = vphi %v162, %v427
    $region68: #{tpu_custom_call.1} parent=1 // loop_header_branch
      %167 = sbr.rel (%p165) target = $region72
    $region69: #{tpu_custom_call.1} parent=1 // loop_body
      %v170 = vld [vmem:[%s6] sm:$0xff]
      %v171 = vld [vmem:[%s6 + $0x8] sm:$0xff]
      %v172 = vld [vmem:[%s6 + $0x10] sm:$0xff]
      %v173 = vld [vmem:[%s6 + $0x18] sm:$0xff]
      %v175 = vsel %vm159, %v169, 0
      %177 = vmatpush.msra.mxu0 0.0
      %178 = vmatpush.msra.mxu0 0.0
      %179 = vmatpush.msra.mxu0 0.0
      %180 = vmatpush.msra.mxu0 0.0
      %181 = vmatpush.msra.mxu0 0.0
      %182 = vmatpush.msra.mxu0 0.0
      %183 = vmatpush.msra.mxu0 0.0
      %184 = vmatpush.msra.mxu0 0.0
      %185 = vmatpush.msra.mxu0 0.0
      %186 = vmatpush.msra.mxu0 0.0
      %187 = vmatpush.msra.mxu0 0.0
      %188 = vmatpush.msra.mxu0 0.0
      %189 = vmatpush.msra.mxu0 %v173
      %190 = vmatpush.msra.mxu0 %v172
      %191 = vmatpush.msra.mxu0 %v171
      %192 = vmatpush.msra.mxu0 %v170
      %193 = vmatmul.f32.gmra.mxu0 %v175
      %v194 = vpop.f32.mrf.mxu0
      %v195 = vadd.f32 0.0, %v194
      %196 = vdwg.mxu0
      %v197 = vld [vmem:[#allocation2] sm:$0xff]
      %v198 = vld [vmem:[#allocation2 + $0x8] sm:$0xff]
      %v200 = vrot.slane %v195, 1
      %v201 = vperm.slane %v195, 0
      %v202 = vperm.slane %v200, 0
      %v205 = vadd.f32 %v197, %v201
      %v206 = vadd.f32 %v198, %v202
      %v207 = vtanh.pop %v205
      %v208 = vtanh.pop %v206
      %v209 = vld [vmem:[#allocation10] sm:$0x1]
      %v211 = vperm.slane %v209, 0
      %v213 = vmul.f32 %v207, %v211
      %v214 = vmul.f32 %v208, %v211
      %v215 = vsel %vm159, %v213, 0.0
      %216 = vadd.xlane.f32.xlu0 %v215
      %v217 = vpop.xlane.xlu0 %216
      %v218 = vsel %vm159, %v214, 0.0
      %219 = vadd.xlane.f32.xlu0 %v218
      %v220 = vpop.xlane.xlu0 %219
      %v221 = vld [vmem:[#allocation3] sm:$0x1]
      %v223 = vperm.slane %v221, 0
      %224 = vset.pattern.permute.xlu0 0
      %225 = vperm.xlu0 %224, %v223
      %v226 = vpop.permute.xlu0 %225
      %v228 = vadd.f32 %v217, %v226
      %v229 = vadd.f32 %v220, %v226
      %v232 = vlaneseq
      %v233 = vand.u32 %v232, 127
      %v234 = vperm.slane %v228, %v233
      %v235 = vperm.slane %v229, %v233
      %vm236 = vcmask 1041409
      %v237 = vsel %vm236, %v235, %v234
      %vm239 = vcmask 58368
      %v240 = vsel %vm239, %v237, -inf
      %241 = vmax.xlane.f32.xlu0 %v240
      %v242 = vpop.xlane.xlu0 %241
      %v244 = vperm.slane %v242, 0
      %v245 = vperm.slane %v242, 1
      %v248 = vsub.f32 %v228, %v244
      %v249 = vsub.f32 %v229, %v245
      %v250 = vmul.f32 %v248, 1.442695
      %v251 = vpow.pop %v250
      %v252 = vmul.f32 %v249, 1.442695
      %v253 = vpow.pop %v252
      %256 = vset.pattern.permute.xlu0 0
      %257 = vperm.xlu0 %256, %v251
      %v258 = vpop.permute.xlu0 %257
      %259 = vset.pattern.permute.xlu0 0
      %260 = vperm.xlu0 %259, %v253
      %v261 = vpop.permute.xlu0 %260
      %v262 = vperm.slane %v258, %v233
      %v263 = vperm.slane %v261, %v233
      %v264 = vsel %vm236, %v263, %v262
      %v266 = vsel %vm239, %v264, 0.0
      %267 = vadd.xlane.f32.xlu0 %v266
      %v268 = vpop.xlane.xlu0 %267
      %v270 = vperm.slane %v268, 0
      %v271 = vperm.slane %v268, 1
      %v274 = vrcp.pop %v270
      %v275 = vmul.f32 %v270, %v274
      %v276 = vsub.f32 1.0, %v275
      %v277 = vmul.f32 %v274, %v276
      %v278 = vadd.f32 %v274, %v277
      %vm279 = vweird.f32 %v270
      %vm280 = vweird.f32 %v274
      %vm281 = vmor %vm279, %vm280
      %v282 = vsel %vm281, %v274, %v278
      %v283 = vand.u32 2147483647, %v270
      %vm284 = vcmp.eq.f32.partialorder %v283, 8.507059e+37
      %v285 = vand.u32 %v270, 2147483648
      %v286 = vor.u32 1.1754944e-38, %v285
      %v287 = vsel %vm284, %v286, %v282
      %v288 = vmul.f32 %v251, %v287
      %v289 = vrcp.pop %v271
      %v290 = vmul.f32 %v271, %v289
      %v291 = vsub.f32 1.0, %v290
      %v292 = vmul.f32 %v289, %v291
      %v293 = vadd.f32 %v289, %v292
      %vm294 = vweird.f32 %v271
      %vm295 = vweird.f32 %v289
      %vm296 = vmor %vm294, %vm295
      %v297 = vsel %vm296, %v289, %v293
      %v298 = vand.u32 2147483647, %v271
      %vm299 = vcmp.eq.f32.partialorder %v298, 8.507059e+37
      %v300 = vand.u32 %v271, 2147483648
      %v301 = vor.u32 1.1754944e-38, %v300
      %v302 = vsel %vm299, %v301, %v297
      %v303 = vmul.f32 %v253, %v302
      %v304 = vld [vmem:[#allocation4] sm:$0xff]
      %v305 = vld [vmem:[#allocation4 + $0x8] sm:$0xff]
      %307 = vset.pattern.permute.xlu0 0
      %308 = vperm.xlu0 %307, %v288
      %v309 = vpop.permute.xlu0 %308
      %312 = vset.pattern.permute.xlu0 0
      %313 = vperm.xlu0 %312, %v303
      %v314 = vpop.permute.xlu0 %313
      %v316 = vmul.f32 %v309, %v304
      %v317 = vmul.f32 %v314, %v305
      %v318 = vsel %vm129, %v316, 0.0
      %v319 = vrot.slane %v318, 4
      %v320 = vadd.f32 %v318, %v319
      %v321 = vrot.slane %v320, 2
      %v322 = vadd.f32 %v320, %v321
      %v323 = vrot.slane %v322, 1
      %v324 = vadd.f32 %v322, %v323
      %v325 = vsel %vm129, %v317, 0.0
      %v326 = vrot.slane %v325, 4
      %v327 = vadd.f32 %v325, %v326
      %v328 = vrot.slane %v327, 2
      %v329 = vadd.f32 %v327, %v328
      %v330 = vrot.slane %v329, 1
      %v331 = vadd.f32 %v329, %v330
      %v332 = vld [vmem:[#allocation12] sm:$0xff]
      %v333 = vld [vmem:[#allocation12 + $0x8] sm:$0xff]
      %v334 = vld [vmem:[#allocation12 + $0x10] sm:$0xff]
      %v335 = vld [vmem:[#allocation12 + $0x18] sm:$0xff]
      %v336 = vld [vmem:[%s10] sm:$0xff]
      %v337 = vld [vmem:[%s10 + $0x8] sm:$0xff]
      %v338 = vld [vmem:[%s10 + $0x10] sm:$0xff]
      %v339 = vld [vmem:[%s10 + $0x18] sm:$0xff]
      %v340 = vld [vmem:[%s10 + $0x20] sm:$0xff]
      %v341 = vld [vmem:[%s10 + $0x28] sm:$0xff]
      %v342 = vld [vmem:[%s10 + $0x30] sm:$0xff]
      %v343 = vld [vmem:[%s10 + $0x38] sm:$0xff]
      %v346 = vsel %vm236, %v331, %v324
      %v347 = vsel %vm129, %v346, 0
      %349 = vmatpush.msra.mxu0 0.0
      %350 = vmatpush.msra.mxu0 0.0
      %351 = vmatpush.msra.mxu0 0.0
      %352 = vmatpush.msra.mxu0 0.0
      %353 = vmatpush.msra.mxu0 0.0
      %354 = vmatpush.msra.mxu0 0.0
      %355 = vmatpush.msra.mxu0 0.0
      %356 = vmatpush.msra.mxu0 0.0
      %357 = vmatpush.msra.mxu0 %v343
      %358 = vmatpush.msra.mxu0 %v342
      %359 = vmatpush.msra.mxu0 %v341
      %360 = vmatpush.msra.mxu0 %v340
      %361 = vmatpush.msra.mxu0 %v339
      %362 = vmatpush.msra.mxu0 %v338
      %363 = vmatpush.msra.mxu0 %v337
      %364 = vmatpush.msra.mxu0 %v336
      %365 = vmatmul.f32.gmra.mxu0 %v347
      %v366 = vpop.f32.mrf.mxu0
      %v367 = vadd.f32 0.0, %v366
      %368 = vdwg.mxu0
      %369 = vmatpush.msra.mxu0 0.0
      %370 = vmatpush.msra.mxu0 0.0
      %371 = vmatpush.msra.mxu0 0.0
      %372 = vmatpush.msra.mxu0 0.0
      %373 = vmatpush.msra.mxu0 0.0
      %374 = vmatpush.msra.mxu0 0.0
      %375 = vmatpush.msra.mxu0 0.0
      %376 = vmatpush.msra.mxu0 0.0
      %377 = vmatpush.msra.mxu0 0.0
      %378 = vmatpush.msra.mxu0 0.0
      %379 = vmatpush.msra.mxu0 0.0
      %380 = vmatpush.msra.mxu0 0.0
      %381 = vmatpush.msra.mxu0 %v335
      %382 = vmatpush.msra.mxu0 %v334
      %383 = vmatpush.msra.mxu0 %v333
      %384 = vmatpush.msra.mxu0 %v332
      %385 = vmatmul.f32.gmra.mxu0 %v175
      %v386 = vpop.f32.mrf.mxu0
      %v387 = vadd.f32 %v367, %v386
      %388 = vdwg.mxu0
      %s389 = smul.u32 %s164, 2
      %s390 = scalar_lea.vmem %s2, %s389
      %v391 = vld [vmem:[%s390] sm:$0x3]
      %v392 = vadd.f32 %v387, %v391
      %v393 = vxor.u32 %v392, 2147483648
      %v394 = vmul.f32 %v393, 1.442695
      %v395 = vpow.pop %v394
      %v396 = vadd.f32 %v395, 1.0
      %v397 = vrcp.pop %v396
      %v398 = vmul.f32 %v396, %v397
      %v399 = vsub.f32 1.0, %v398
      %v400 = vmul.f32 %v397, %v399
      %v401 = vadd.f32 %v397, %v400
      %vm402 = vweird.f32 %v396
      %vm403 = vweird.f32 %v397
      %vm404 = vmor %vm402, %vm403
      %v405 = vsel %vm404, %v397, %v401
      %v406 = vand.u32 2147483647, %v396
      %vm407 = vcmp.eq.f32.partialorder %v406, 8.507059e+37
      %v408 = vand.u32 %v396, 2147483648
      %v409 = vor.u32 1.1754944e-38, %v408
      %v410 = vsel %vm407, %v409, %v405
      %v411 = vmul.f32 1.0, %v410
      %s412 = scalar_lea.vmem [#allocation7], %s389
      %v413 = vld [vmem:[%s412] sm:$0x3]
      %415 = vrot.lane.b32.xlu0 %v413, 32
      %v416 = vpop.permute.xlu0 %415
      %v418 = vadd.f32 %v387, %v416
      %v419 = vtanh.pop %v418
      %v420 = vsub.f32 1.0, %v411
      %v421 = vmul.f32 %v420, %v169
      %423 = vrot.lane.b32.xlu0 %v419, 96
      %v424 = vpop.permute.xlu0 %423
      %v426 = vmul.f32 %v411, %v424
      %v427 = vadd.f32 %v421, %v426
      %s428 = scalar_lea.vmem [#allocation13], %s389
      %vm429 = vcmask 254976
      %430 = vst.msk [vmem:[%s428] sm:$0x3] %vm429, %v427
    $region70: #{tpu_custom_call.1} parent=1 // loop_footer
      %s168 = sadd.s32 1, %s164
    $region71: #{tpu_custom_call.1} parent=1 // loop_footer_branch
      %163 = sbr.rel target = $region67
    $region72: #{tpu_custom_call.1} parent=1 // loop_exit
      _
    // Predicated region
    $region73: #{tpu_custom_call.1} parent=1 // pred_check
      _
    $region74: #{tpu_custom_call.1} parent=1 // pred_check_branch
      %432 = sbr.rel (0) target = $region76
    $region75: #{tpu_custom_call.1} parent=1 // pred_region
      %434 = vsyncadd [#allocation6], 0
      %s435 = sshll.u32 [#allocation13], 4
      %s436 = int_to_ptr.vmem [resolvable:$true] %s435
      %s437 = sshll.u32 %s11, 4
      %s438 = int_to_ptr.hbm [resolvable:$true] %s437
      %443 = dma.vmem_to_hbm [thread:$0]  %s436, 128, %s438, [#allocation6], 32, 32, 2
    $region76: #{tpu_custom_call.1} parent=1 // pred_fallthru
      _
    // Predicated region
    $region77: #{tpu_custom_call.1} parent=1 // pred_check
      _
    $region78: #{tpu_custom_call.1} parent=1 // pred_check_branch
      %445 = sbr.rel (0) target = $region80
    $region79: #{tpu_custom_call.1} parent=1 // pred_region
      %447 = dma.done [#allocation6], 128
    $region80: #{tpu_custom_call.1} parent=1 // pred_fallthru
      _
    %448 = vsyncpa [#allocation5], 1
    %449 = vsyncpa [#allocation8], 1
    %450 = vsyncpa [#allocation11], 1
    %451 = vsyncpa [#allocation6], 1

</llo_original>
